<compile_context>
chip_gen: v7x
topology: tpu7x:2x2x1
jax: 0.10.0
libtpu: 0.0.40
codegen_flags: <defaults>
</compile_context>

<pallas_src>
import functools

import jax
import jax.numpy as jnp
from jax.experimental import pallas as pl
from jax.experimental.pallas import tpu as pltpu


# ---------------------------------------------------------------------------
# Pallas kernel: token-sum accumulate -> mean -> l2-norm -> fused similarity
# ---------------------------------------------------------------------------
def _sprompt_kernel(x_ref, keys_ref, xnorm_ref, sim_ref, acc_ref, *, n_total):
    j = pl.program_id(1)                              # token-chunk axis (arbitrary)

    @pl.when(j == 0)
    def _():
        acc_ref[...] = jnp.zeros_like(acc_ref)

    # HBM traffic is paid in x's storage dtype (bf16 halves it); math is f32.
    x = x_ref[...].astype(jnp.float32)                # (TB, TN, D)
    acc_ref[...] += jnp.sum(x, axis=1)                # partial token sum

    @pl.when(j == pl.num_programs(1) - 1)
    def _():
        eps = jnp.float32(1e-12)
        x_mean = acc_ref[...] * jnp.float32(1.0 / n_total)      # embedding_key='mean'
        ss = jnp.sum(x_mean * x_mean, axis=-1, keepdims=True)
        x_norm = x_mean * jax.lax.rsqrt(jnp.maximum(ss, eps))   # matches l2_normalize
        xnorm_ref[...] = x_norm
        # (TB, D) @ (D, P_pad): keys pre-normalized & pre-transposed -> canonical
        # MXU feed, lane-dense 128-wide output; zero-padded key cols give 0 sims.
        sim_ref[...] = jax.lax.dot_general(
            x_norm, keys_ref[...],
            dimension_numbers=(((1,), (0,)), ((), ())),
            preferred_element_type=jnp.float32)


# ---------------------------------------------------------------------------
# Generation-aware tiling / VMEM budgeting
# ---------------------------------------------------------------------------
def _round_up(x, m):
    return ((x + m - 1) // m) * m


def _chip_info():
    """(physical VMEM bytes, chip has 2 TensorCores). Conservative fallbacks."""
    vmem_bytes = 64 << 20            # v7x has the smallest VMEM; safe default
    two_tensorcores = False
    try:
        info = pltpu.get_tpu_info()
        vmem_bytes = int(getattr(info, "vmem_capacity_bytes", vmem_bytes))
    except Exception:
        pass
    try:
        kind = jax.devices()[0].device_kind.lower()
        two_tensorcores = "v7" in kind            # v7x: 2 TCs share a chip
    except Exception:
        pass
    return vmem_bytes, two_tensorcores


def _choose_tiles(B, N, D, x_itemsize, vmem_bytes, two_tensorcores):
    """Pick (TB, TN): double-buffered x slab targets ~1/4 of physical VMEM."""
    budget = max(8 << 20, vmem_bytes // 4)

    # Token tile: keep the full token axis unless even TB=8 blows the budget, and
    # only split when a multiple-of-8 divisor of N exists (so the running sum
    # never sees partial / out-of-bounds token rows).
    tn = N
    if N > 8 and 2 * 8 * N * D * x_itemsize > budget:
        cap = max(8, budget // (2 * 8 * D * x_itemsize))
        t = (min(N, cap) // 8) * 8
        while t >= 8:
            if N % t == 0:
                tn = t
                break
            t -= 8
        # TODO(synk): N with no multiple-of-8 divisor (e.g. 197/577) keeps the full
        # token axis per block; vmem_limit_bytes below is sized for that case.

    # Batch tile.
    if B <= 8:
        tb = B
    else:
        tb = (budget // max(1, 2 * tn * D * x_itemsize)) // 8 * 8
        tb = int(max(8, tb))
        tb = min(tb, _round_up(B, 8))
        if two_tensorcores:
            # v7x: keep >=2 "parallel" grid steps so both TensorCores stream x.
            tb = min(tb, max(8, _round_up(pl.cdiv(B, 2), 8)))
        # v5e/v6e: single TC -> keep the tile as large as VMEM allows (each grid
        # step is a serial loop iteration, not a launch).
    return tb, tn


@functools.lru_cache(maxsize=None)
def _build_call(B, N, D, P, x_itemsize, TB, TN, vmem_bytes, buffered_keys):
    assert N % TN == 0
    nn = N // TN
    grid = (pl.cdiv(B, TB), nn)

    key_bufs = 1 if buffered_keys else 2
    est = (2 * TB * TN * D * x_itemsize     # double-buffered x tiles
           + key_bufs * D * P * 4           # constant key slab
           + 2 * TB * (D + P) * 4           # double-buffered outputs
           + TB * D * 4)                    # token-sum scratch
    vmem_limit = est + (4 << 20)            # headroom for Mosaic internals
    vmem_limit = max(vmem_limit, 16 << 20)
    vmem_limit = int(min(vmem_limit, max(16 << 20, vmem_bytes - (2 << 20))))

    key_spec_kwargs = {}
    if buffered_keys:
        # Same block every step -> no re-fetch; skip the second VMEM buffer.
        key_spec_kwargs["pipeline_mode"] = pl.Buffered(1)

    cost = pl.CostEstimate(
        flops=int(2 * B * D * P + B * N * D + 3 * B * D),
        transcendentals=int(B),
        bytes_accessed=int(B * N * D * x_itemsize + D * P * 4 + B * (D + P) * 4))

    call = pl.pallas_call(
        functools.partial(_sprompt_kernel, n_total=N),
        out_shape=(
            jax.ShapeDtypeStruct((B, D), jnp.float32),   # x_embed_norm
            jax.ShapeDtypeStruct((B, P), jnp.float32),   # fused s|t|m similarities
        ),
        grid=grid,
        in_specs=[
            pl.BlockSpec((TB, TN, D), lambda i, j: (i, j, 0)),
            pl.BlockSpec((D, P), lambda i, j: (0, 0), **key_spec_kwargs),
        ],
        out_specs=(
            pl.BlockSpec((TB, D), lambda i, j: (i, 0)),
            pl.BlockSpec((TB, P), lambda i, j: (i, 0)),
        ),
        scratch_shapes=[pltpu.VMEM((TB, D), jnp.float32)],
        compiler_params=pltpu.CompilerParams(
            dimension_semantics=("parallel", "arbitrary"),
            vmem_limit_bytes=vmem_limit),
        cost_estimate=cost,
    )
    return jax.jit(call)


_BUFFERED_KEYS_OK = True


def sprompt_pallas(x_embed, keys_t, *, token_tile=None):
    """x_embed: (B, N, D) f32 or bf16.  keys_t: (D, P_pad) f32, pre-L2-normalized,
    pre-transposed concat of the s/t/m key pools (zero-padded to 128 columns).
    Returns (x_embed_norm (B, D) f32, similarities (B, P_pad) f32)."""
    global _BUFFERED_KEYS_OK
    B, N, D = x_embed.shape
    Dk, P = keys_t.shape
    assert Dk == D
    x_itemsize = int(jnp.dtype(x_embed.dtype).itemsize)

    vmem_bytes, two_tc = _chip_info()
    TB, TN = _choose_tiles(B, N, D, x_itemsize, vmem_bytes, two_tc)
    if token_tile is not None:
        assert N % token_tile == 0 and (token_tile == N or token_tile % 8 == 0)
        TN = token_tile

    if _BUFFERED_KEYS_OK:
        try:
            return _build_call(B, N, D, P, x_itemsize, TB, TN, vmem_bytes, True)(
                x_embed, keys_t)
        except Exception:
            # TODO(synk): pipeline_mode=pl.Buffered(1) unsupported on this jax
            # build; fall back to default double-buffered constant keys input.
            _BUFFERED_KEYS_OK = False
    return _build_call(B, N, D, P, x_itemsize, TB, TN, vmem_bytes, False)(
        x_embed, keys_t)


# ---------------------------------------------------------------------------
# Module wrapper (JAX equivalent of SPrompt_mean with prompt_pool=True,
# prompt_key=False, embedding_key='mean', use_prefix_tune_for_e_prompt=False,
# batchwise_prompt=False)
# ---------------------------------------------------------------------------
def _l2_normalize(v, eps=1e-12):
    ss = jnp.sum(v * v, axis=-1, keepdims=True)
    return v * jax.lax.rsqrt(jnp.maximum(ss, eps))


class SPromptMean:
    def __init__(self, key, embed_dim=32, num_layers=1,
                 s_length=5, s_pool_size=10, s_top_k=2,
                 t_length=5, t_pool_size=8, t_top_k=2,
                 m_length=5, m_pool_size=6, m_top_k=2):
        self.s_length, self.t_length, self.m_length = s_length, t_length, m_length
        self.s_top_k, self.t_top_k, self.m_top_k = s_top_k, t_top_k, m_top_k
        self.s_pool_size, self.t_pool_size, self.m_pool_size = (
            s_pool_size, t_pool_size, m_pool_size)

        ks, kt, km = jax.random.split(key, 3)
        # prompt_init == 'uniform' -> nn.init.uniform_(-1, 1)
        self.s_prompt = jax.random.uniform(
            ks, (num_layers, s_pool_size, s_length, embed_dim), jnp.float32, -1.0, 1.0)
        self.t_prompt = jax.random.uniform(
            kt, (num_layers, t_pool_size, t_length, embed_dim), jnp.float32, -1.0, 1.0)
        self.m_prompt = jax.random.uniform(
            km, (num_layers, m_pool_size, m_length, embed_dim), jnp.float32, -1.0, 1.0)

        # prompt_key=False branch: key = mean of prompt over dims (0, 2)
        self.s_prompt_key = jnp.mean(self.s_prompt, axis=(0, 2))
        self.t_prompt_key = jnp.mean(self.t_prompt, axis=(0, 2))
        self.m_prompt_key = jnp.mean(self.m_prompt, axis=(0, 2))

        # Static per-module: normalize once here instead of every forward call.
        self.s_prompt_key_norm = _l2_normalize(self.s_prompt_key)
        self.t_prompt_key_norm = _l2_normalize(self.t_prompt_key)
        self.m_prompt_key_norm = _l2_normalize(self.m_prompt_key)

        # Fused, lane-dense, PRE-TRANSPOSED key slab for the kernel:
        # concat s|t|m keys, zero-pad to 128 rows, transpose to (D, P_pad).
        keys_cat = jnp.concatenate(
            [self.s_prompt_key_norm, self.t_prompt_key_norm, self.m_prompt_key_norm],
            axis=0)
        p_total = keys_cat.shape[0]
        p_pad = max(128, ((p_total + 127) // 128) * 128)
        self._p_total = p_total
        keys_padded = jnp.concatenate(
            [keys_cat, jnp.zeros((p_pad - p_total, embed_dim), jnp.float32)], axis=0)
        self.keys_padded_t = jnp.asarray(keys_padded.T)      # (D, P_pad)

    def __call__(self, x_embed, s_prompt_mask=None, t_prompt_mask=None):
        B = x_embed.shape[0]
        Ps, Pt, Pm = self.s_pool_size, self.t_pool_size, self.m_pool_size

        x_norm, sims = sprompt_pallas(x_embed, self.keys_padded_t)
        s_sim = sims[:, :Ps]
        t_sim = sims[:, Ps:Ps + Pt]
        m_sim = sims[:, Ps + Pt:Ps + Pt + Pm]

        out = {}
        out['s_similarity'] = s_sim
        # NOTE: original PyTorch code assigns out['t_similarity'] twice; the final
        # value is m_similarity — reproduced exactly.
        out['t_similarity'] = m_sim

        _, s_idx = jax.lax.top_k(s_sim, self.s_top_k)
        _, t_idx = jax.lax.top_k(t_sim, self.t_top_k)
        _, m_idx = jax.lax.top_k(m_sim, self.m_top_k)
        # TODO(synk): batchwise_prompt=True path (torch.unique + count re-vote) not
        # implemented; default config uses batchwise_prompt=False.
        if s_prompt_mask is not None:
            s_idx = s_prompt_mask
        if t_prompt_mask is not None:
            t_idx = t_prompt_mask
        out['s_prompt_idx'] = s_idx
        out['t_prompt_idx'] = t_idx
        out['m_prompt_idx'] = m_idx

        def gather_prompt(prompt, idx, top_k, length):
            raw = jnp.take(prompt, idx, axis=1)               # (L, B, k, len, D)
            L, _, _, _, D = raw.shape
            return raw.reshape(L, B, top_k * length, D)

        s_bp = gather_prompt(self.s_prompt, s_idx, self.s_top_k, self.s_length)
        t_bp = gather_prompt(self.t_prompt, t_idx, self.t_top_k, self.t_length)
        m_bp = gather_prompt(self.m_prompt, m_idx, self.m_top_k, self.m_length)

        s_bkey = jnp.take(self.s_prompt_key_norm, s_idx, axis=0)   # (B, k, D)
        t_bkey = jnp.take(self.t_prompt_key_norm, t_idx, axis=0)
        m_bkey = jnp.take(self.m_prompt_key_norm, m_idx, axis=0)

        out['s_selected_key'] = s_bkey
        out['s_prompt_key_norm'] = self.s_prompt_key_norm
        out['t_selected_key'] = t_bkey
        out['t_prompt_key_norm'] = self.t_prompt_key_norm
        out['m_selected_key'] = m_bkey
        out['m_prompt_key_norm'] = self.m_prompt_key_norm
        out['x_embed_norm'] = x_norm

        x_norm_e = x_norm[:, None, :]
        out['s_reduce_sim'] = jnp.sum(s_bkey * x_norm_e) / B
        out['t_reduce_sim'] = jnp.sum(t_bkey * x_norm_e) / B
        out['m_reduce_sim'] = jnp.sum(m_bkey * x_norm_e) / B

        out['s_batched_prompt'] = s_bp
        out['t_batched_prompt'] = t_bp
        out['m_batched_prompt'] = m_bp
        return out


# ---------------------------------------------------------------------------
# Reference (pure JAX) for the in-kernel hot path
# ---------------------------------------------------------------------------
def _ref_similarity(x_embed, key):
    x_norm = _l2_normalize(jnp.mean(x_embed.astype(jnp.float32), axis=1))
    return x_norm @ _l2_normalize(key).T


if __name__ == "__main__":
    key = jax.random.PRNGKey(0)
    k_x, k_mod, k_x2 = jax.random.split(key, 3)
    B, N, D = 2, 8, 32
    x_embed = jax.random.normal(k_x, (B, N, D), jnp.float32)

    module = SPromptMean(k_mod, embed_dim=D)
    out = module(x_embed)
    jax.block_until_ready(out)

    # 1) f32 path: fused in-kernel hot path vs pure JAX
    ref_s = _ref_similarity(x_embed, module.s_prompt_key)
    ref_t = _ref_similarity(x_embed, module.t_prompt_key)
    ref_m = _ref_similarity(x_embed, module.m_prompt_key)
    assert jnp.allclose(out['s_similarity'], ref_s, atol=1e-5), "s similarity mismatch"
    # t_similarity reproduces the PyTorch double-assignment bug -> holds m sims
    assert jnp.allclose(out['t_similarity'], ref_m, atol=1e-5), "t(=m) similarity mismatch"
    ref_xn = _l2_normalize(jnp.mean(x_embed, axis=1))
    assert jnp.allclose(out['x_embed_norm'], ref_xn, atol=1e-5), "x_embed_norm mismatch"
    assert out['s_batched_prompt'].shape == (1, B, module.s_top_k * module.s_length, D)
    assert out['t_batched_prompt'].shape == (1, B, module.t_top_k * module.t_length, D)
    assert out['m_batched_prompt'].shape == (1, B, module.m_top_k * module.m_length, D)

    # 2) bf16 input path (halves HBM bytes; kernel upcasts after the load)
    x_bf16 = x_embed.astype(jnp.bfloat16)
    xn_bf, sims_bf = sprompt_pallas(x_bf16, module.keys_padded_t)
    jax.block_until_ready((xn_bf, sims_bf))
    ref_s_bf = _ref_similarity(x_bf16, module.s_prompt_key)
    assert jnp.allclose(sims_bf[:, :module.s_pool_size], ref_s_bf, atol=1e-4), \
        "bf16 similarity mismatch"

    # 3) token-axis accumulator path (N split into 2 chunks, arbitrary axis)
    N2 = 16
    x2 = jax.random.normal(k_x2, (B, N2, D), jnp.float32)
    xn2, sims2 = sprompt_pallas(x2, module.keys_padded_t, token_tile=8)
    jax.block_until_ready((xn2, sims2))
    ref_s2 = _ref_similarity(x2, module.s_prompt_key)
    ref_xn2 = _l2_normalize(jnp.mean(x2, axis=1))
    assert jnp.allclose(sims2[:, :module.s_pool_size], ref_s2, atol=1e-5), \
        "token-split similarity mismatch"
    assert jnp.allclose(xn2, ref_xn2, atol=1e-5), "token-split x_embed_norm mismatch"

    print("KERNEL_OK")
</pallas_src>

<mosaic_0001>
module attributes {stable_mosaic.version = 11 : i64} {
  func.func @_sprompt_kernel(%arg0: i32, %arg1: i32, %arg2: memref<2x8x32xf32, #tpu.memory_space<vmem>>, %arg3: memref<32x128xf32, #tpu.memory_space<vmem>>, %arg4: memref<2x32xf32, #tpu.memory_space<vmem>>, %arg5: memref<2x128xf32, #tpu.memory_space<vmem>>, %arg6: memref<2x32xf32, #tpu.memory_space<vmem>>) attributes {dimension_semantics = [#tpu.dimension_semantics<parallel>, #tpu.dimension_semantics<arbitrary>], iteration_bounds = array<i64: 1, 1>, scalar_prefetch = 0 : i64, scratch_operands = 1 : i64, tpu.core_type = #tpu.core_type<tc>, window_params = [{transform_indices = @transform_0, window_bounds = array<i64: 2, 8, 32>}, {pipeline_mode = #tpu.pipeline_mode<synchronous>, transform_indices = @transform_1, window_bounds = array<i64: 32, 128>}, {transform_indices = @transform_2, window_bounds = array<i64: 2, 32>}, {transform_indices = @transform_3, window_bounds = array<i64: 2, 128>}]} {
    %c0_i32 = arith.constant 0 : i32
    %0 = arith.cmpi eq, %arg1, %c0_i32 : i32
    %1 = arith.extui %0 : i1 to i32
    %c0_i32_0 = arith.constant 0 : i32
    %2 = arith.cmpi ne, %1, %c0_i32_0 : i32
    scf.if %2 {
      %cst_9 = arith.constant 0.000000e+00 : f32
      %11 = vector.broadcast %cst_9 : f32 to vector<2x32xf32>
      %c0_10 = arith.constant 0 : index
      %c0_11 = arith.constant 0 : index
      %12 = vector.load %arg6[%c0_10, %c0_11] : memref<2x32xf32, #tpu.memory_space<vmem>>, vector<2x32xf32>
      tpu.vector_store %arg6[%c0_10, %c0_11], %11 {strides = array<i32>} : memref<2x32xf32, #tpu.memory_space<vmem>>, vector<2x32xf32>,
    } else {
    }
    %c0 = arith.constant 0 : index
    %c0_1 = arith.constant 0 : index
    %c0_2 = arith.constant 0 : index
    %3 = vector.load %arg2[%c0, %c0_1, %c0_2] : memref<2x8x32xf32, #tpu.memory_space<vmem>>, vector<2x8x32xf32>
    %c0_3 = arith.constant 0 : index
    %c0_4 = arith.constant 0 : index
    %4 = vector.load %arg6[%c0_3, %c0_4] : memref<2x32xf32, #tpu.memory_space<vmem>>, vector<2x32xf32>
    %cst = arith.constant dense<0.000000e+00> : vector<2x32xf32>
    %5 = vector.multi_reduction <add>, %3, %cst [1] : vector<2x8x32xf32> to vector<2x32xf32>
    %6 = arith.addf %4, %5 : vector<2x32xf32>
    %c0_5 = arith.constant 0 : index
    %c0_6 = arith.constant 0 : index
    %7 = vector.load %arg6[%c0_5, %c0_6] : memref<2x32xf32, #tpu.memory_space<vmem>>, vector<2x32xf32>
    tpu.vector_store %arg6[%c0_5, %c0_6], %6 {strides = array<i32>} : memref<2x32xf32, #tpu.memory_space<vmem>>, vector<2x32xf32>,
    %c0_i32_7 = arith.constant 0 : i32
    %8 = arith.cmpi eq, %arg1, %c0_i32_7 : i32
    %9 = arith.extui %8 : i1 to i32
    %c0_i32_8 = arith.constant 0 : i32
    %10 = arith.cmpi ne, %9, %c0_i32_8 : i32
    scf.if %10 {
      %c0_9 = arith.constant 0 : index
      %c0_10 = arith.constant 0 : index
      %11 = vector.load %arg6[%c0_9, %c0_10] : memref<2x32xf32, #tpu.memory_space<vmem>>, vector<2x32xf32>
      %cst_11 = arith.constant 1.250000e-01 : f32
      %12 = vector.broadcast %cst_11 : f32 to vector<2x32xf32>
      %13 = arith.mulf %11, %12 : vector<2x32xf32>
      %14 = arith.mulf %13, %13 : vector<2x32xf32>
      %cst_12 = arith.constant dense<0.000000e+00> : vector<2xf32>
      %15 = vector.multi_reduction <add>, %14, %cst_12 [1] : vector<2x32xf32> to vector<2xf32>
      %16 = vector.shape_cast %15 : vector<2xf32> to vector<2x1xf32>
      %cst_13 = arith.constant 9.99999996E-13 : f32
      %17 = vector.broadcast %cst_13 : f32 to vector<2x1xf32>
      %18 = arith.maximumf %16, %17 : vector<2x1xf32>
      %19 = math.rsqrt %18 : vector<2x1xf32>
      %20 = vector.broadcast %19 : vector<2x1xf32> to vector<2x32xf32>
      %21 = arith.mulf %13, %20 : vector<2x32xf32>
      %c0_14 = arith.constant 0 : index
      %c0_15 = arith.constant 0 : index
      %22 = vector.load %arg4[%c0_14, %c0_15] : memref<2x32xf32, #tpu.memory_space<vmem>>, vector<2x32xf32>
      tpu.vector_store %arg4[%c0_14, %c0_15], %21 {strides = array<i32>} : memref<2x32xf32, #tpu.memory_space<vmem>>, vector<2x32xf32>,
      %c0_16 = arith.constant 0 : index
      %c0_17 = arith.constant 0 : index
      %23 = vector.load %arg3[%c0_16, %c0_17] : memref<32x128xf32, #tpu.memory_space<vmem>>, vector<32x128xf32>
      %cst_18 = arith.constant dense<0.000000e+00> : vector<2x128xf32>
      %24 = tpu.matmul %21, %23, %cst_18 {dimension_numbers = #tpu.dot_dimension_numbers<[1], [0], [0], [1], [0, 0, 1, 1], [], []>} : vector<2x32xf32>, vector<32x128xf32>, vector<2x128xf32> -> vector<2x128xf32>
      %c0_19 = arith.constant 0 : index
      %c0_20 = arith.constant 0 : index
      %25 = vector.load %arg5[%c0_19, %c0_20] : memref<2x128xf32, #tpu.memory_space<vmem>>, vector<2x128xf32>
      tpu.vector_store %arg5[%c0_19, %c0_20], %24 {strides = array<i32>} : memref<2x128xf32, #tpu.memory_space<vmem>>, vector<2x128xf32>,
    } else {
    }
    return
  }
  func.func @transform_0(%arg0: i32, %arg1: i32) -> (i32, i32, i32) {
    %c0_i32 = arith.constant 0 : i32
    %c0_i32_0 = arith.constant 0 : i32
    return %arg0, %arg1, %c0_i32 : i32, i32, i32
  }
  func.func @transform_1(%arg0: i32, %arg1: i32) -> (i32, i32) {
    %c0_i32 = arith.constant 0 : i32
    %c0_i32_0 = arith.constant 0 : i32
    %c0_i32_1 = arith.constant 0 : i32
    return %c0_i32, %c0_i32_0 : i32, i32
  }
  func.func @transform_2(%arg0: i32, %arg1: i32) -> (i32, i32) {
    %c0_i32 = arith.constant 0 : i32
    %c0_i32_0 = arith.constant 0 : i32
    return %arg0, %c0_i32 : i32, i32
  }
  func.func @transform_3(%arg0: i32, %arg1: i32) -> (i32, i32) {
    %c0_i32 = arith.constant 0 : i32
    %c0_i32_0 = arith.constant 0 : i32
    return %arg0, %c0_i32 : i32, i32
  }
}

module attributes {stable_mosaic.version = 11 : i64} {
  func.func @_sprompt_kernel(%arg0: i32, %arg1: i32, %arg2: memref<2x8x32xf32, #tpu.memory_space<vmem>>, %arg3: memref<32x128xf32, #tpu.memory_space<vmem>>, %arg4: memref<2x32xf32, #tpu.memory_space<vmem>>, %arg5: memref<2x128xf32, #tpu.memory_space<vmem>>, %arg6: memref<2x32xf32, #tpu.memory_space<vmem>>) attributes {dimension_semantics = [#tpu.dimension_semantics<parallel>, #tpu.dimension_semantics<arbitrary>], iteration_bounds = array<i64: 1, 1>, scalar_prefetch = 0 : i64, scratch_operands = 1 : i64, tpu.core_type = #tpu.core_type<tc>, window_params = [{transform_indices = @transform_0, window_bounds = array<i64: 2, 8, 32>}, {pipeline_mode = #tpu.pipeline_mode<synchronous>, transform_indices = @transform_1, window_bounds = array<i64: 32, 128>}, {transform_indices = @transform_2, window_bounds = array<i64: 2, 32>}, {transform_indices = @transform_3, window_bounds = array<i64: 2, 128>}]} {
    %c0_i32 = arith.constant 0 : i32
    %0 = arith.cmpi eq, %arg1, %c0_i32 : i32
    %1 = arith.extui %0 : i1 to i32
    %c0_i32_0 = arith.constant 0 : i32
    %2 = arith.cmpi ne, %1, %c0_i32_0 : i32
    scf.if %2 {
      %cst_9 = arith.constant 0.000000e+00 : f32
      %11 = vector.broadcast %cst_9 : f32 to vector<2x32xf32>
      %c0_10 = arith.constant 0 : index
      %c0_11 = arith.constant 0 : index
      %12 = vector.load %arg6[%c0_10, %c0_11] : memref<2x32xf32, #tpu.memory_space<vmem>>, vector<2x32xf32>
      tpu.vector_store %arg6[%c0_10, %c0_11], %11 {strides = array<i32>} : memref<2x32xf32, #tpu.memory_space<vmem>>, vector<2x32xf32>,
    } else {
    }
    %c0 = arith.constant 0 : index
    %c0_1 = arith.constant 0 : index
    %c0_2 = arith.constant 0 : index
    %3 = vector.load %arg2[%c0, %c0_1, %c0_2] : memref<2x8x32xf32, #tpu.memory_space<vmem>>, vector<2x8x32xf32>
    %c0_3 = arith.constant 0 : index
    %c0_4 = arith.constant 0 : index
    %4 = vector.load %arg6[%c0_3, %c0_4] : memref<2x32xf32, #tpu.memory_space<vmem>>, vector<2x32xf32>
    %cst = arith.constant dense<0.000000e+00> : vector<2x32xf32>
    %5 = vector.multi_reduction <add>, %3, %cst [1] : vector<2x8x32xf32> to vector<2x32xf32>
    %6 = arith.addf %4, %5 : vector<2x32xf32>
    %c0_5 = arith.constant 0 : index
    %c0_6 = arith.constant 0 : index
    %7 = vector.load %arg6[%c0_5, %c0_6] : memref<2x32xf32, #tpu.memory_space<vmem>>, vector<2x32xf32>
    tpu.vector_store %arg6[%c0_5, %c0_6], %6 {strides = array<i32>} : memref<2x32xf32, #tpu.memory_space<vmem>>, vector<2x32xf32>,
    %c0_i32_7 = arith.constant 0 : i32
    %8 = arith.cmpi eq, %arg1, %c0_i32_7 : i32
    %9 = arith.extui %8 : i1 to i32
    %c0_i32_8 = arith.constant 0 : i32
    %10 = arith.cmpi ne, %9, %c0_i32_8 : i32
    scf.if %10 {
      %c0_9 = arith.constant 0 : index
      %c0_10 = arith.constant 0 : index
      %11 = vector.load %arg6[%c0_9, %c0_10] : memref<2x32xf32, #tpu.memory_space<vmem>>, vector<2x32xf32>
      %cst_11 = arith.constant 1.250000e-01 : f32
      %12 = vector.broadcast %cst_11 : f32 to vector<2x32xf32>
      %13 = arith.mulf %11, %12 : vector<2x32xf32>
      %14 = arith.mulf %13, %13 : vector<2x32xf32>
      %cst_12 = arith.constant dense<0.000000e+00> : vector<2xf32>
      %15 = vector.multi_reduction <add>, %14, %cst_12 [1] : vector<2x32xf32> to vector<2xf32>
      %16 = vector.shape_cast %15 : vector<2xf32> to vector<2x1xf32>
      %cst_13 = arith.constant 9.99999996E-13 : f32
      %17 = vector.broadcast %cst_13 : f32 to vector<2x1xf32>
      %18 = arith.maximumf %16, %17 : vector<2x1xf32>
      %19 = math.rsqrt %18 : vector<2x1xf32>
      %20 = vector.broadcast %19 : vector<2x1xf32> to vector<2x32xf32>
      %21 = arith.mulf %13, %20 : vector<2x32xf32>
      %c0_14 = arith.constant 0 : index
      %c0_15 = arith.constant 0 : index
      %22 = vector.load %arg4[%c0_14, %c0_15] : memref<2x32xf32, #tpu.memory_space<vmem>>, vector<2x32xf32>
      tpu.vector_store %arg4[%c0_14, %c0_15], %21 {strides = array<i32>} : memref<2x32xf32, #tpu.memory_space<vmem>>, vector<2x32xf32>,
      %c0_16 = arith.constant 0 : index
      %c0_17 = arith.constant 0 : index
      %23 = vector.load %arg3[%c0_16, %c0_17] : memref<32x128xf32, #tpu.memory_space<vmem>>, vector<32x128xf32>
      %cst_18 = arith.constant dense<0.000000e+00> : vector<2x128xf32>
      %24 = tpu.matmul %21, %23, %cst_18 {dimension_numbers = #tpu.dot_dimension_numbers<[1], [0], [0], [1], [0, 0, 1, 1], [], []>} : vector<2x32xf32>, vector<32x128xf32>, vector<2x128xf32> -> vector<2x128xf32>
      %c0_19 = arith.constant 0 : index
      %c0_20 = arith.constant 0 : index
      %25 = vector.load %arg5[%c0_19, %c0_20] : memref<2x128xf32, #tpu.memory_space<vmem>>, vector<2x128xf32>
      tpu.vector_store %arg5[%c0_19, %c0_20], %24 {strides = array<i32>} : memref<2x128xf32, #tpu.memory_space<vmem>>, vector<2x128xf32>,
    } else {
    }
    return
  }
  func.func @transform_0(%arg0: i32, %arg1: i32) -> (i32, i32, i32) {
    %c0_i32 = arith.constant 0 : i32
    %c0_i32_0 = arith.constant 0 : i32
    return %arg0, %arg1, %c0_i32 : i32, i32, i32
  }
  func.func @transform_1(%arg0: i32, %arg1: i32) -> (i32, i32) {
    %c0_i32 = arith.constant 0 : i32
    %c0_i32_0 = arith.constant 0 : i32
    %c0_i32_1 = arith.constant 0 : i32
    return %c0_i32, %c0_i32_0 : i32, i32
  }
  func.func @transform_2(%arg0: i32, %arg1: i32) -> (i32, i32) {
    %c0_i32 = arith.constant 0 : i32
    %c0_i32_0 = arith.constant 0 : i32
    return %arg0, %c0_i32 : i32, i32
  }
  func.func @transform_3(%arg0: i32, %arg1: i32) -> (i32, i32) {
    %c0_i32 = arith.constant 0 : i32
    %c0_i32_0 = arith.constant 0 : i32
    return %arg0, %c0_i32 : i32, i32
  }
}

</mosaic_0001>

<llo_original>
// kernel: tpu_custom_call.1
$region0: #{tpu_custom_call.1}
  #allocation0 [shape = 'u32[]', space=smem, size = 0x4, offset = 0x4, fixed_abs, tag = 'smem constant byte address 0x4 - core index']
  #allocation1 [shape = 'u32[144,128]{1,0:T(1,128)}', space=vmem, size = 0x12000, scoped, tag = 'internal scratch']
  #allocation2 [shape = 'f32[2,32]{1,0:T(2,128)}', space=vmem, size = 0x400, scoped, tag = 'scratch operand']
  %s0 = inlined_call_operand.hbm [shape: f32[2,8,32], index: 0, kind: input, shape index: {}]
  %s1 = inlined_call_operand.hbm [shape: f32[32,128], index: 1, kind: input, shape index: {}]
  %s2 = inlined_call_operand.hbm [shape: f32[2,32], index: 2, kind: output, shape index: {0}]
  %s3 = inlined_call_operand.hbm [shape: f32[2,128], index: 3, kind: output, shape index: {1}]
  %4 = xla_tuple %s2, %s3
  %s5 = sld [smem:[#allocation0]]
  $region42: #{tpu_custom_call.1} parent=0
    _
  %s7 = ssub.s32 1, %s5
  %s8 = scalar_select 0, %s7, %s5
  $region1: #{tpu_custom_call.1} parent=0
    #allocation3 [shape = 'u8[8192]{0}', space=vmem, size = 0x2000, scoped, tag = 'input window, operand 0, single buffered']
    #allocation4 [shape = 's32[1]{0}', space=sflag, size = 0x4, scoped, tag = 'scoped memory for tpu_custom_call.1']
    #allocation5 [shape = 's32[1]{0}', space=sflag, size = 0x4, scoped, tag = 'scoped memory for tpu_custom_call.1']
    #allocation6 [shape = 'u8[16384]{0}', space=vmem, size = 0x4000, scoped, tag = 'input window, operand 1, single buffered']
    #allocation7 [shape = 's32[1]{0}', space=sflag, size = 0x4, scoped, tag = 'scoped memory for tpu_custom_call.1']
    #allocation8 [shape = 'u8[1024]{0}', space=vmem, size = 0x400, scoped, tag = 'output window, operand 0, single buffered']
    #allocation9 [shape = 'u8[1024]{0}', space=vmem, size = 0x400, scoped, tag = 'output window, operand 1, single buffered']
    #allocation10 [shape = 's32[1]{0}', space=sflag, size = 0x4, scoped, tag = 'scoped memory for tpu_custom_call.1']
    %9 = vsyncpa [#allocation4], 0
    %10 = vsyncpa [#allocation7], 0
    %11 = vsyncpa [#allocation5], 0
    %12 = vsyncpa [#allocation10], 0
    // Predicated region
    $region2: #{tpu_custom_call.1} parent=1 // pred_check
      _
    $region3: #{tpu_custom_call.1} parent=1 // pred_check_branch
      %14 = sbr.rel (0) target = $region5
    $region4: #{tpu_custom_call.1} parent=1 // pred_region
      %s16 = ssub.s32 256, 256
      %17 = vsyncadd [#allocation4], %s16
      %s18 = sshll.u32 [#allocation3], 4
      %s19 = int_to_ptr.vmem [resolvable:$true] %s18
      %24 = dma.hbm_to_vmem [thread:$0]  %s0, 256, %s19, [#allocation4], 128, 128, 8
    $region5: #{tpu_custom_call.1} parent=1 // pred_fallthru
      _
    // Predicated region
    $region6: #{tpu_custom_call.1} parent=1 // pred_check
      _
    $region7: #{tpu_custom_call.1} parent=1 // pred_check_branch
      %26 = sbr.rel (0) target = $region9
    $region8: #{tpu_custom_call.1} parent=1 // pred_region
      %s28 = ssub.s32 512, 512
      %29 = vsyncadd [#allocation7], %s28
      %s30 = sshll.u32 [#allocation6], 4
      %s31 = int_to_ptr.vmem [resolvable:$true] %s30
      %36 = dma.hbm_to_vmem [thread:$0]  %s1, 512, %s31, [#allocation7], 128, 128, 8
    $region9: #{tpu_custom_call.1} parent=1 // pred_fallthru
      _
    // Predicated region
    $region10: #{tpu_custom_call.1} parent=1 // pred_check
      _
    $region11: #{tpu_custom_call.1} parent=1 // pred_check_branch
      %38 = sbr.rel (0) target = $region13
    $region12: #{tpu_custom_call.1} parent=1 // pred_region
      %39 = dma.done [#allocation4], 256
    $region13: #{tpu_custom_call.1} parent=1 // pred_fallthru
      _
    // Predicated region
    $region14: #{tpu_custom_call.1} parent=1 // pred_check
      _
    $region15: #{tpu_custom_call.1} parent=1 // pred_check_branch
      %41 = sbr.rel (0) target = $region17
    $region16: #{tpu_custom_call.1} parent=1 // pred_region
      %42 = dma.done [#allocation7], 512
    $region17: #{tpu_custom_call.1} parent=1 // pred_fallthru
      _
    %p43 = scmp.eq.s32.totalorder 0, 0
    // Predicated region
    $region18: #{tpu_custom_call.1} parent=1 // pred_check
      %p44 = pneg %p43
    $region19: #{tpu_custom_call.1} parent=1 // pred_check_branch
      %46 = sbr.rel (%p44) target = $region21
    $region20: #{tpu_custom_call.1} parent=1 // pred_region
      %vm47 = vcmask 254976
      %48 = vst.msk [vmem:[#allocation2] sm:$0x3] %vm47, 0.0
    $region21: #{tpu_custom_call.1} parent=1 // pred_fallthru
      _
    %v49 = vld [vmem:[#allocation3] sm:$0xff]
    %v50 = vld [vmem:[#allocation3 + $0x8] sm:$0xff]
    %v51 = vld [vmem:[#allocation2] sm:$0x3]
    %vm52 = vcmask 261120
    %v53 = vsel %vm52, %v49, 0.0
    %v54 = vrot.slane %v53, 4
    %v55 = vadd.f32 %v53, %v54
    %v56 = vrot.slane %v55, 2
    %v57 = vadd.f32 %v55, %v56
    %v58 = vrot.slane %v57, 1
    %v59 = vadd.f32 %v57, %v58
    %v60 = vsel %vm52, %v50, 0.0
    %v61 = vrot.slane %v60, 4
    %v62 = vadd.f32 %v60, %v61
    %v63 = vrot.slane %v62, 2
    %v64 = vadd.f32 %v62, %v63
    %v65 = vrot.slane %v64, 1
    %v66 = vadd.f32 %v64, %v65
    %vm69 = vcmask 1041409
    %v70 = vsel %vm69, %v66, %v59
    %v72 = vadd.f32 %v51, %v70
    %vm73 = vcmask 254976
    %74 = vst.msk [vmem:[#allocation2] sm:$0x3] %vm73, %v72
    // Predicated region
    $region22: #{tpu_custom_call.1} parent=1 // pred_check
      %p75 = pneg %p43
    $region23: #{tpu_custom_call.1} parent=1 // pred_check_branch
      %77 = sbr.rel (%p75) target = $region25
    $region24: #{tpu_custom_call.1} parent=1 // pred_region
      %v78 = vld [vmem:[#allocation2] sm:$0x3]
      %v79 = vmul.f32 %v78, 0.125
      %v80 = vmul.f32 %v79, %v79
      %v81 = vsel %vm73, %v80, 0.0
      %82 = vadd.xlane.f32.xlu0 %v81
      %v83 = vpop.xlane.xlu0 %82
      %v84 = vmax.f32 %v83, 1e-12
      %v85 = vrsqrt.pop %v84
      %v86 = vmul.f32 %v79, %v85
      %87 = vst.msk [vmem:[#allocation8] sm:$0x3] %vm73, %v86
      %v88 = vld [vmem:[#allocation6] sm:$0xff]
      %v89 = vld [vmem:[#allocation6 + $0x8] sm:$0xff]
      %v90 = vld [vmem:[#allocation6 + $0x10] sm:$0xff]
      %v91 = vld [vmem:[#allocation6 + $0x18] sm:$0xff]
      %v93 = vsel %vm52, %v86, 0
      %95 = vmatprep.subr.mxu0 0.0
      %96 = vmatpush1.msra.mxu0 %v88
      %97 = vmatprep.subr.mxu0 0.0
      %98 = vmatpush1.msra.mxu0 %v89
      %99 = vmatprep.subr.mxu0 0.0
      %100 = vmatpush1.msra.mxu0 %v90
      %101 = vmatprep.subr.mxu0 0.0
      %102 = vmatpush1.msra.mxu0 %v91
      %103 = vmatprep.subr.mxu0 0.0
      %104 = vmatpush1.msra.mxu0 0.0
      %105 = vmatprep.subr.mxu0 0.0
      %106 = vmatpush1.msra.mxu0 0.0
      %107 = vmatprep.subr.mxu0 0.0
      %108 = vmatpush1.msra.mxu0 0.0
      %109 = vmatprep.subr.mxu0 0.0
      %110 = vmatpush1.msra.mxu0 0.0
      %111 = vmatprep.subr.mxu0 0.0
      %112 = vmatpush1.msra.mxu0 0.0
      %113 = vmatprep.subr.mxu0 0.0
      %114 = vmatpush1.msra.mxu0 0.0
      %115 = vmatprep.subr.mxu0 0.0
      %116 = vmatpush1.msra.mxu0 0.0
      %117 = vmatprep.subr.mxu0 0.0
      %118 = vmatpush1.msra.mxu0 0.0
      %119 = vmatprep.subr.mxu0 0.0
      %120 = vmatpush1.msra.mxu0 0.0
      %121 = vmatprep.subr.mxu0 0.0
      %122 = vmatpush1.msra.mxu0 0.0
      %123 = vmatprep.subr.mxu0 0.0
      %124 = vmatpush1.msra.mxu0 0.0
      %125 = vmatprep.subr.mxu0 0.0
      %126 = vmatpush1.msra.mxu0 0.0
      %127 = vmatprep.subr.mxu0 0.0
      %128 = vmatpush1.msra.mxu0 0.0
      %129 = vmatprep.subr.mxu0 0.0
      %130 = vmatpush1.msra.mxu0 0.0
      %131 = vmatprep.subr.mxu0 0.0
      %132 = vmatpush1.msra.mxu0 0.0
      %133 = vmatprep.subr.mxu0 0.0
      %134 = vmatpush1.msra.mxu0 0.0
      %135 = vmatprep.subr.mxu0 0.0
      %136 = vmatpush1.msra.mxu0 0.0
      %137 = vmatprep.subr.mxu0 0.0
      %138 = vmatpush1.msra.mxu0 0.0
      %139 = vmatprep.subr.mxu0 0.0
      %140 = vmatpush1.msra.mxu0 0.0
      %141 = vmatprep.subr.mxu0 0.0
      %142 = vmatpush1.msra.mxu0 0.0
      %143 = vmatprep.subr.mxu0 0.0
      %144 = vmatpush1.msra.mxu0 0.0
      %145 = vmatprep.subr.mxu0 0.0
      %146 = vmatpush1.msra.mxu0 0.0
      %147 = vmatprep.subr.mxu0 0.0
      %148 = vmatpush1.msra.mxu0 0.0
      %149 = vmatprep.subr.mxu0 0.0
      %150 = vmatpush1.msra.mxu0 0.0
      %151 = vmatprep.subr.mxu0 0.0
      %152 = vmatpush1.msra.mxu0 0.0
      %153 = vmatprep.subr.mxu0 0.0
      %154 = vmatpush1.msra.mxu0 0.0
      %155 = vmatprep.subr.mxu0 0.0
      %156 = vmatpush1.msra.mxu0 0.0
      %157 = vmatprep.subr.mxu0 0.0
      %158 = vmatpush1.msra.mxu0 0.0
      %159 = vmatprep.mubr.f32.mxu0 0.0
      %160 = vmatmul.mubr.f32.gmra.mrb[0].mxu0 %v93
      %v161 = vpop.f32.mrb[0].mxu0
      %v162 = vadd.f32 0.0, %v161
      %v163 = vpop.f32.mrb[0].mxu0
      %164 = vdwg.mxu0
      %165 = vst [vmem:[#allocation9] sm:$0x3] %v162
    $region25: #{tpu_custom_call.1} parent=1 // pred_fallthru
      _
    // Predicated region
    $region26: #{tpu_custom_call.1} parent=1 // pred_check
      _
    $region27: #{tpu_custom_call.1} parent=1 // pred_check_branch
      %167 = sbr.rel (0) target = $region29
    $region28: #{tpu_custom_call.1} parent=1 // pred_region
      %s169 = ssub.s32 32, 32
      %170 = vsyncadd [#allocation5], %s169
      %s172 = sshll.u32 [#allocation8], 4
      %s173 = int_to_ptr.vmem [resolvable:$true] %s172
      %175 = dma.vmem_to_hbm [thread:$0]  %s173, 32, %s2, [#allocation5]
    $region29: #{tpu_custom_call.1} parent=1 // pred_fallthru
      _
    // Predicated region
    $region30: #{tpu_custom_call.1} parent=1 // pred_check
      _
    $region31: #{tpu_custom_call.1} parent=1 // pred_check_branch
      %177 = sbr.rel (0) target = $region33
    $region32: #{tpu_custom_call.1} parent=1 // pred_region
      %s179 = ssub.s32 32, 32
      %180 = vsyncadd [#allocation10], %s179
      %s182 = sshll.u32 [#allocation9], 4
      %s183 = int_to_ptr.vmem [resolvable:$true] %s182
      %185 = dma.vmem_to_hbm [thread:$0]  %s183, 32, %s3, [#allocation10]
    $region33: #{tpu_custom_call.1} parent=1 // pred_fallthru
      _
    // Predicated region
    $region34: #{tpu_custom_call.1} parent=1 // pred_check
      _
    $region35: #{tpu_custom_call.1} parent=1 // pred_check_branch
      %187 = sbr.rel (0) target = $region37
    $region36: #{tpu_custom_call.1} parent=1 // pred_region
      %188 = dma.done [#allocation5], 32
    $region37: #{tpu_custom_call.1} parent=1 // pred_fallthru
      _
    // Predicated region
    $region38: #{tpu_custom_call.1} parent=1 // pred_check
      _
    $region39: #{tpu_custom_call.1} parent=1 // pred_check_branch
      %190 = sbr.rel (0) target = $region41
    $region40: #{tpu_custom_call.1} parent=1 // pred_region
      %191 = dma.done [#allocation10], 32
    $region41: #{tpu_custom_call.1} parent=1 // pred_fallthru
      _
    %192 = vsyncpa [#allocation4], 1
    %193 = vsyncpa [#allocation7], 1
    %194 = vsyncpa [#allocation5], 1
    %195 = vsyncpa [#allocation10], 1

// kernel: tpu_custom_call.1
$region0: #{tpu_custom_call.1}
  #allocation0 [shape = 'u32[]', space=smem, size = 0x4, offset = 0x4, fixed_abs, tag = 'smem constant byte address 0x4 - core index']
  #allocation1 [shape = 'u32[144,128]{1,0:T(1,128)}', space=vmem, size = 0x12000, scoped, tag = 'internal scratch']
  #allocation2 [shape = 'f32[2,32]{1,0:T(2,128)}', space=vmem, size = 0x400, scoped, tag = 'scratch operand']
  %s0 = inlined_call_operand.hbm [shape: f32[2,8,32], index: 0, kind: input, shape index: {}]
  %s1 = inlined_call_operand.hbm [shape: f32[32,128], index: 1, kind: input, shape index: {}]
  %s2 = inlined_call_operand.hbm [shape: f32[2,32], index: 2, kind: output, shape index: {0}]
  %s3 = inlined_call_operand.hbm [shape: f32[2,128], index: 3, kind: output, shape index: {1}]
  %4 = xla_tuple %s2, %s3
  %s5 = sld [smem:[#allocation0]]
  $region42: #{tpu_custom_call.1} parent=0
    _
  %s7 = ssub.s32 1, %s5
  %s8 = scalar_select 0, %s7, %s5
  $region1: #{tpu_custom_call.1} parent=0
    #allocation3 [shape = 'u8[8192]{0}', space=vmem, size = 0x2000, scoped, tag = 'input window, operand 0, single buffered']
    #allocation4 [shape = 's32[1]{0}', space=sflag, size = 0x4, scoped, tag = 'scoped memory for tpu_custom_call.1']
    #allocation5 [shape = 's32[1]{0}', space=sflag, size = 0x4, scoped, tag = 'scoped memory for tpu_custom_call.1']
    #allocation6 [shape = 'u8[16384]{0}', space=vmem, size = 0x4000, scoped, tag = 'input window, operand 1, single buffered']
    #allocation7 [shape = 's32[1]{0}', space=sflag, size = 0x4, scoped, tag = 'scoped memory for tpu_custom_call.1']
    #allocation8 [shape = 'u8[1024]{0}', space=vmem, size = 0x400, scoped, tag = 'output window, operand 0, single buffered']
    #allocation9 [shape = 'u8[1024]{0}', space=vmem, size = 0x400, scoped, tag = 'output window, operand 1, single buffered']
    #allocation10 [shape = 's32[1]{0}', space=sflag, size = 0x4, scoped, tag = 'scoped memory for tpu_custom_call.1']
    %9 = vsyncpa [#allocation4], 0
    %10 = vsyncpa [#allocation7], 0
    %11 = vsyncpa [#allocation5], 0
    %12 = vsyncpa [#allocation10], 0
    // Predicated region
    $region2: #{tpu_custom_call.1} parent=1 // pred_check
      _
    $region3: #{tpu_custom_call.1} parent=1 // pred_check_branch
      %14 = sbr.rel (0) target = $region5
    $region4: #{tpu_custom_call.1} parent=1 // pred_region
      %s16 = ssub.s32 256, 256
      %17 = vsyncadd [#allocation4], %s16
      %s18 = sshll.u32 [#allocation3], 4
      %s19 = int_to_ptr.vmem [resolvable:$true] %s18
      %24 = dma.hbm_to_vmem [thread:$0]  %s0, 256, %s19, [#allocation4], 128, 128, 8
    $region5: #{tpu_custom_call.1} parent=1 // pred_fallthru
      _
    // Predicated region
    $region6: #{tpu_custom_call.1} parent=1 // pred_check
      _
    $region7: #{tpu_custom_call.1} parent=1 // pred_check_branch
      %26 = sbr.rel (0) target = $region9
    $region8: #{tpu_custom_call.1} parent=1 // pred_region
      %s28 = ssub.s32 512, 512
      %29 = vsyncadd [#allocation7], %s28
      %s30 = sshll.u32 [#allocation6], 4
      %s31 = int_to_ptr.vmem [resolvable:$true] %s30
      %36 = dma.hbm_to_vmem [thread:$0]  %s1, 512, %s31, [#allocation7], 128, 128, 8
    $region9: #{tpu_custom_call.1} parent=1 // pred_fallthru
      _
    // Predicated region
    $region10: #{tpu_custom_call.1} parent=1 // pred_check
      _
    $region11: #{tpu_custom_call.1} parent=1 // pred_check_branch
      %38 = sbr.rel (0) target = $region13
    $region12: #{tpu_custom_call.1} parent=1 // pred_region
      %39 = dma.done [#allocation4], 256
    $region13: #{tpu_custom_call.1} parent=1 // pred_fallthru
      _
    // Predicated region
    $region14: #{tpu_custom_call.1} parent=1 // pred_check
      _
    $region15: #{tpu_custom_call.1} parent=1 // pred_check_branch
      %41 = sbr.rel (0) target = $region17
    $region16: #{tpu_custom_call.1} parent=1 // pred_region
      %42 = dma.done [#allocation7], 512
    $region17: #{tpu_custom_call.1} parent=1 // pred_fallthru
      _
    %p43 = scmp.eq.s32.totalorder 0, 0
    // Predicated region
    $region18: #{tpu_custom_call.1} parent=1 // pred_check
      %p44 = pneg %p43
    $region19: #{tpu_custom_call.1} parent=1 // pred_check_branch
      %46 = sbr.rel (%p44) target = $region21
    $region20: #{tpu_custom_call.1} parent=1 // pred_region
      %vm47 = vcmask 254976
      %48 = vst.msk [vmem:[#allocation2] sm:$0x3] %vm47, 0.0
    $region21: #{tpu_custom_call.1} parent=1 // pred_fallthru
      _
    %v49 = vld [vmem:[#allocation3] sm:$0xff]
    %v50 = vld [vmem:[#allocation3 + $0x8] sm:$0xff]
    %v51 = vld [vmem:[#allocation2] sm:$0x3]
    %vm52 = vcmask 261120
    %v53 = vsel %vm52, %v49, 0.0
    %v54 = vrot.slane %v53, 4
    %v55 = vadd.f32 %v53, %v54
    %v56 = vrot.slane %v55, 2
    %v57 = vadd.f32 %v55, %v56
    %v58 = vrot.slane %v57, 1
    %v59 = vadd.f32 %v57, %v58
    %v60 = vsel %vm52, %v50, 0.0
    %v61 = vrot.slane %v60, 4
    %v62 = vadd.f32 %v60, %v61
    %v63 = vrot.slane %v62, 2
    %v64 = vadd.f32 %v62, %v63
    %v65 = vrot.slane %v64, 1
    %v66 = vadd.f32 %v64, %v65
    %vm69 = vcmask 1041409
    %v70 = vsel %vm69, %v66, %v59
    %v72 = vadd.f32 %v51, %v70
    %vm73 = vcmask 254976
    %74 = vst.msk [vmem:[#allocation2] sm:$0x3] %vm73, %v72
    // Predicated region
    $region22: #{tpu_custom_call.1} parent=1 // pred_check
      %p75 = pneg %p43
    $region23: #{tpu_custom_call.1} parent=1 // pred_check_branch
      %77 = sbr.rel (%p75) target = $region25
    $region24: #{tpu_custom_call.1} parent=1 // pred_region
      %v78 = vld [vmem:[#allocation2] sm:$0x3]
      %v79 = vmul.f32 %v78, 0.125
      %v80 = vmul.f32 %v79, %v79
      %v81 = vsel %vm73, %v80, 0.0
      %82 = vadd.xlane.f32.xlu0 %v81
      %v83 = vpop.xlane.xlu0 %82
      %v84 = vmax.f32 %v83, 1e-12
      %v85 = vrsqrt.pop %v84
      %v86 = vmul.f32 %v79, %v85
      %87 = vst.msk [vmem:[#allocation8] sm:$0x3] %vm73, %v86
      %v88 = vld [vmem:[#allocation6] sm:$0xff]
      %v89 = vld [vmem:[#allocation6 + $0x8] sm:$0xff]
      %v90 = vld [vmem:[#allocation6 + $0x10] sm:$0xff]
      %v91 = vld [vmem:[#allocation6 + $0x18] sm:$0xff]
      %v93 = vsel %vm52, %v86, 0
      %95 = vmatprep.subr.mxu0 0.0
      %96 = vmatpush1.msra.mxu0 %v88
      %97 = vmatprep.subr.mxu0 0.0
      %98 = vmatpush1.msra.mxu0 %v89
      %99 = vmatprep.subr.mxu0 0.0
      %100 = vmatpush1.msra.mxu0 %v90
      %101 = vmatprep.subr.mxu0 0.0
      %102 = vmatpush1.msra.mxu0 %v91
      %103 = vmatprep.subr.mxu0 0.0
      %104 = vmatpush1.msra.mxu0 0.0
      %105 = vmatprep.subr.mxu0 0.0
      %106 = vmatpush1.msra.mxu0 0.0
      %107 = vmatprep.subr.mxu0 0.0
      %108 = vmatpush1.msra.mxu0 0.0
      %109 = vmatprep.subr.mxu0 0.0
      %110 = vmatpush1.msra.mxu0 0.0
      %111 = vmatprep.subr.mxu0 0.0
      %112 = vmatpush1.msra.mxu0 0.0
      %113 = vmatprep.subr.mxu0 0.0
      %114 = vmatpush1.msra.mxu0 0.0
      %115 = vmatprep.subr.mxu0 0.0
      %116 = vmatpush1.msra.mxu0 0.0
      %117 = vmatprep.subr.mxu0 0.0
      %118 = vmatpush1.msra.mxu0 0.0
      %119 = vmatprep.subr.mxu0 0.0
      %120 = vmatpush1.msra.mxu0 0.0
      %121 = vmatprep.subr.mxu0 0.0
      %122 = vmatpush1.msra.mxu0 0.0
      %123 = vmatprep.subr.mxu0 0.0
      %124 = vmatpush1.msra.mxu0 0.0
      %125 = vmatprep.subr.mxu0 0.0
      %126 = vmatpush1.msra.mxu0 0.0
      %127 = vmatprep.subr.mxu0 0.0
      %128 = vmatpush1.msra.mxu0 0.0
      %129 = vmatprep.subr.mxu0 0.0
      %130 = vmatpush1.msra.mxu0 0.0
      %131 = vmatprep.subr.mxu0 0.0
      %132 = vmatpush1.msra.mxu0 0.0
      %133 = vmatprep.subr.mxu0 0.0
      %134 = vmatpush1.msra.mxu0 0.0
      %135 = vmatprep.subr.mxu0 0.0
      %136 = vmatpush1.msra.mxu0 0.0
      %137 = vmatprep.subr.mxu0 0.0
      %138 = vmatpush1.msra.mxu0 0.0
      %139 = vmatprep.subr.mxu0 0.0
      %140 = vmatpush1.msra.mxu0 0.0
      %141 = vmatprep.subr.mxu0 0.0
      %142 = vmatpush1.msra.mxu0 0.0
      %143 = vmatprep.subr.mxu0 0.0
      %144 = vmatpush1.msra.mxu0 0.0
      %145 = vmatprep.subr.mxu0 0.0
      %146 = vmatpush1.msra.mxu0 0.0
      %147 = vmatprep.subr.mxu0 0.0
      %148 = vmatpush1.msra.mxu0 0.0
      %149 = vmatprep.subr.mxu0 0.0
      %150 = vmatpush1.msra.mxu0 0.0
      %151 = vmatprep.subr.mxu0 0.0
      %152 = vmatpush1.msra.mxu0 0.0
      %153 = vmatprep.subr.mxu0 0.0
      %154 = vmatpush1.msra.mxu0 0.0
      %155 = vmatprep.subr.mxu0 0.0
      %156 = vmatpush1.msra.mxu0 0.0
      %157 = vmatprep.subr.mxu0 0.0
      %158 = vmatpush1.msra.mxu0 0.0
      %159 = vmatprep.mubr.f32.mxu0 0.0
      %160 = vmatmul.mubr.f32.gmra.mrb[0].mxu0 %v93
      %v161 = vpop.f32.mrb[0].mxu0
      %v162 = vadd.f32 0.0, %v161
      %v163 = vpop.f32.mrb[0].mxu0
      %164 = vdwg.mxu0
      %165 = vst [vmem:[#allocation9] sm:$0x3] %v162
    $region25: #{tpu_custom_call.1} parent=1 // pred_fallthru
      _
    // Predicated region
    $region26: #{tpu_custom_call.1} parent=1 // pred_check
      _
    $region27: #{tpu_custom_call.1} parent=1 // pred_check_branch
      %167 = sbr.rel (0) target = $region29
    $region28: #{tpu_custom_call.1} parent=1 // pred_region
      %s169 = ssub.s32 32, 32
      %170 = vsyncadd [#allocation5], %s169
      %s172 = sshll.u32 [#allocation8], 4
      %s173 = int_to_ptr.vmem [resolvable:$true] %s172
      %175 = dma.vmem_to_hbm [thread:$0]  %s173, 32, %s2, [#allocation5]
    $region29: #{tpu_custom_call.1} parent=1 // pred_fallthru
      _
    // Predicated region
    $region30: #{tpu_custom_call.1} parent=1 // pred_check
      _
    $region31: #{tpu_custom_call.1} parent=1 // pred_check_branch
      %177 = sbr.rel (0) target = $region33
    $region32: #{tpu_custom_call.1} parent=1 // pred_region
      %s179 = ssub.s32 32, 32
      %180 = vsyncadd [#allocation10], %s179
      %s182 = sshll.u32 [#allocation9], 4
      %s183 = int_to_ptr.vmem [resolvable:$true] %s182
      %185 = dma.vmem_to_hbm [thread:$0]  %s183, 32, %s3, [#allocation10]
    $region33: #{tpu_custom_call.1} parent=1 // pred_fallthru
      _
    // Predicated region
    $region34: #{tpu_custom_call.1} parent=1 // pred_check
      _
    $region35: #{tpu_custom_call.1} parent=1 // pred_check_branch
      %187 = sbr.rel (0) target = $region37
    $region36: #{tpu_custom_call.1} parent=1 // pred_region
      %188 = dma.done [#allocation5], 32
    $region37: #{tpu_custom_call.1} parent=1 // pred_fallthru
      _
    // Predicated region
    $region38: #{tpu_custom_call.1} parent=1 // pred_check
      _
    $region39: #{tpu_custom_call.1} parent=1 // pred_check_branch
      %190 = sbr.rel (0) target = $region41
    $region40: #{tpu_custom_call.1} parent=1 // pred_region
      %191 = dma.done [#allocation10], 32
    $region41: #{tpu_custom_call.1} parent=1 // pred_fallthru
      _
    %192 = vsyncpa [#allocation4], 1
    %193 = vsyncpa [#allocation7], 1
    %194 = vsyncpa [#allocation5], 1
    %195 = vsyncpa [#allocation10], 1

</llo_original>
